<compile_context>
chip_gen: v6e
topology: v6e:2x2x1
jax: 0.10.0
libtpu: 0.0.40
codegen_flags: <defaults>
</compile_context>

<pallas_src>
import jax
import jax.numpy as jnp
from jax.experimental import pallas as pl
from jax.experimental.pallas import tpu as pltpu

LANES = 128                 # vreg lane width
TS = 1024                   # sublane tile: points per grid step = TS * 128
SMALL_N_FAST_PATH = 1 << 14 # below this many total points, pure-jnp path wins


def _project_kernel(params_ref, pts_ref, out_ref):
    # params_ref: SMEM [B, 12] = [A0(4), A1(4), T2(4)]  (intrinsics pre-folded)
    # pts_ref:    VMEM block (1, 3, S, 128)
    # out_ref:    VMEM block (1, 2, S, 128)
    b = pl.program_id(0)

    # Hoist all per-batch scalars once per grid step (SMEM scalar reads).
    a00 = params_ref[b, 0]
    a01 = params_ref[b, 1]
    a02 = params_ref[b, 2]
    a03 = params_ref[b, 3]
    a10 = params_ref[b, 4]
    a11 = params_ref[b, 5]
    a12 = params_ref[b, 6]
    a13 = params_ref[b, 7]
    t20 = params_ref[b, 8]
    t21 = params_ref[b, 9]
    t22 = params_ref[b, 10]
    t23 = params_ref[b, 11]

    x = pts_ref[0, 0]   # (S, 128) dense slab of full vregs
    y = pts_ref[0, 1]
    z = pts_ref[0, 2]

    u_num = a00 * x + a01 * y + a02 * z + a03   # fx*px + cx*pz
    v_num = a10 * x + a11 * y + a12 * z + a13   # fy*py + cy*pz
    pz    = t20 * x + t21 * y + t22 * z + t23   # depth

    inv_z = pl.reciprocal(pz, approx=False)     # exact (fx=5000 amplifies error)

    out_ref[0, 0] = u_num * inv_z
    out_ref[0, 1] = v_num * inv_z


def perspective_project_packed(pts_packed, params12):
    """Zero-copy entry point.

    pts_packed: [B, 3, NB, 128] f32 (SoA, lane-packed), params12: [B, 12] f32
    -> [B, 2, NB, 128] f32.
    """
    B, _, NB, _ = pts_packed.shape
    S = TS if NB >= TS else NB                     # full-dim fallback
    # v7x has 2 TensorCores sharded over the "parallel" grid axes: make sure a
    # B==1 input still produces >= 2 grid steps.
    if B == 1 and NB >= 16 and pl.cdiv(NB, S) < 2:
        S = ((NB // 2 + 7) // 8) * 8               # multiple of 8, < NB
    grid = (B, pl.cdiv(NB, S))
    return pl.pallas_call(
        _project_kernel,
        out_shape=jax.ShapeDtypeStruct((B, 2, NB, LANES), pts_packed.dtype),
        grid=grid,
        in_specs=[
            # Tiny [B,12] scalar table, staged whole into SMEM.
            pl.BlockSpec(memory_space=pltpu.MemorySpace.SMEM),
            pl.BlockSpec((1, 3, S, LANES), lambda b, n: (b, 0, n, 0)),
        ],
        out_specs=pl.BlockSpec((1, 2, S, LANES), lambda b, n: (b, 0, n, 0)),
        compiler_params=pltpu.CompilerParams(
            dimension_semantics=("parallel", "parallel")),
    )(params12, pts_packed)


def _project_jnp(points, params12):
    """Fused pure-jnp fast path for small inputs (same folded-params math)."""
    A = params12.reshape(params12.shape[0], 3, 4)                    # [B,3,4]
    num = jnp.einsum('bni,bri->bnr', points, A[:, :, :3]) + A[:, None, :, 3]
    return num[..., :2] / num[..., 2:3]


def perspective_project(points, params12, *, force_pallas=False):
    """points: [B, N, 3] f32, params12: [B, 12] f32 -> [B, N, 2] f32."""
    B, N, _ = points.shape
    if not force_pallas and B * N <= SMALL_N_FAST_PATH:
        # Launch + layout-copy overhead dominates at this size; let XLA fuse it.
        return _project_jnp(points, params12)

    NB = pl.cdiv(N, LANES)
    n_pad = NB * LANES
    # Pad FIRST (tiny, constant 1.0 keeps padded depth away from zero), then a
    # single transpose+reshape copy into the packed SoA layout.
    if n_pad != N:
        points = jnp.pad(points, ((0, 0), (0, n_pad - N), (0, 0)),
                         constant_values=1.0)
    pts_packed = jnp.transpose(points, (0, 2, 1)).reshape(B, 3, NB, LANES)

    out = perspective_project_packed(pts_packed, params12)          # [B,2,NB,128]
    out = out.reshape(B, 2, n_pad)[:, :, :N]
    return jnp.transpose(out, (0, 2, 1))                            # [B, N, 2]


class PerspectiveCamera:
    """JAX port of the PyTorch PerspectiveCamera module (forward only)."""

    def __init__(self, rotation=None, translation=None, focal_length_x=5000.0,
                 focal_length_y=5000.0, batch_size=1, center=None,
                 dtype=jnp.float32):
        self.batch_size = batch_size
        self.dtype = dtype
        self.focal_length_x = focal_length_x * jnp.ones((batch_size, 1), dtype)
        self.focal_length_y = focal_length_y * jnp.ones((batch_size, 1), dtype)
        self.center = (jnp.zeros((batch_size, 2), dtype)
                       if center is None else jnp.asarray(center, dtype))
        self.pitch = jnp.zeros((batch_size, 1), dtype)
        self.roll = jnp.zeros((batch_size, 1), dtype)
        self.yaw = jnp.zeros((batch_size, 1), dtype)
        self.translation = (jnp.zeros((batch_size, 3), dtype)
                            if translation is None
                            else jnp.asarray(translation, dtype))
        # TODO(synk): nn.Parameter bookkeeping / reset_params are training-time
        # state management with no kernel equivalent; forward math only here.

    def ea2rm(self):
        x, y, z = self.pitch, self.yaw, self.roll
        cos_x, sin_x = jnp.cos(x), jnp.sin(x)
        cos_y, sin_y = jnp.cos(y), jnp.sin(y)
        cos_z, sin_z = jnp.cos(z), jnp.sin(z)
        row0 = jnp.concatenate(
            [cos_y * cos_z, sin_x * sin_y * cos_z - cos_x * sin_z,
             cos_x * sin_y * cos_z + sin_x * sin_z], axis=1)
        row1 = jnp.concatenate(
            [cos_y * sin_z, sin_x * sin_y * sin_z + cos_x * cos_z,
             cos_x * sin_y * sin_z - sin_x * cos_z], axis=1)
        row2 = jnp.concatenate([-sin_y, sin_x * cos_y, cos_x * cos_y], axis=1)
        return jnp.stack([row0, row1, row2], axis=1)  # [B, 3, 3]

    def _pack_params(self):
        """[B, 12] = [fx*T0 + cx*T2, fy*T1 + cy*T2, T2] (intrinsics folded)."""
        R = self.ea2rm()                                               # [B,3,3]
        T = jnp.concatenate([R, self.translation[:, :, None]], axis=2) # [B,3,4]
        fx, fy = self.focal_length_x, self.focal_length_y              # [B,1]
        cx, cy = self.center[:, 0:1], self.center[:, 1:2]
        a0 = fx * T[:, 0] + cx * T[:, 2]
        a1 = fy * T[:, 1] + cy * T[:, 2]
        return jnp.concatenate([a0, a1, T[:, 2]], axis=1).astype(self.dtype)

    def __call__(self, points, *, force_pallas=False):
        return perspective_project(points.astype(self.dtype),
                                   self._pack_params(),
                                   force_pallas=force_pallas)


def _reference_forward(cam: PerspectiveCamera, points):
    """Pure-jnp replica of the PyTorch forward for verification."""
    B = cam.batch_size
    camera_mat = jnp.zeros((B, 2, 2), cam.dtype)
    camera_mat = camera_mat.at[:, 0, 0].set(cam.focal_length_x.flatten())
    camera_mat = camera_mat.at[:, 1, 1].set(cam.focal_length_y.flatten())
    rotation = cam.ea2rm()
    top = jnp.concatenate([rotation, cam.translation[:, :, None]], axis=2)
    bot = jnp.tile(jnp.array([[[0.0, 0.0, 0.0, 1.0]]], cam.dtype), (B, 1, 1))
    camera_transform = jnp.concatenate([top, bot], axis=1)
    homog = jnp.ones(points.shape[:-1] + (1,), points.dtype)
    points_h = jnp.concatenate([points, homog], axis=-1)
    projected = jnp.einsum('bki,bji->bjk', camera_transform, points_h)
    img = projected[:, :, :2] / projected[:, :, 2][..., None]
    img = jnp.einsum('bki,bji->bjk', camera_mat, img) + cam.center[:, None, :]
    return img


if __name__ == "__main__":
    B, N = 2, 200
    key = jax.random.PRNGKey(0)
    pts = jax.random.normal(key, (B, N, 3), dtype=jnp.float32)
    # keep depth strictly positive / away from zero for a well-posed projection
    pts = pts.at[..., 2].set(jnp.abs(pts[..., 2]) + 2.0)

    cam = PerspectiveCamera(batch_size=B)
    ref = _reference_forward(cam, pts)

    # 1) Module path (small-N fast dispatch, pure jnp).
    out_fast = jax.block_until_ready(cam(pts))
    assert out_fast.shape == (B, N, 2), out_fast.shape
    assert jnp.allclose(out_fast, ref, rtol=1e-5, atol=1e-3), \
        float(jnp.max(jnp.abs(out_fast - ref)))

    # 2) Pallas kernel path (forced, so the TPU kernel is exercised here too).
    out_kernel = jax.block_until_ready(cam(pts, force_pallas=True))
    assert out_kernel.shape == (B, N, 2), out_kernel.shape
    assert jnp.allclose(out_kernel, ref, rtol=1e-5, atol=1e-3), \
        float(jnp.max(jnp.abs(out_kernel - ref)))

    print("KERNEL_OK")
</pallas_src>

<mosaic_0001>
module attributes {stable_mosaic.version = 11 : i64} {
  func.func @_project_kernel(%arg0: i32, %arg1: i32, %arg2: memref<2x12xf32, #tpu.memory_space<smem>>, %arg3: memref<1x3x2x128xf32, #tpu.memory_space<vmem>>, %arg4: memref<1x2x2x128xf32, #tpu.memory_space<vmem>>) attributes {dimension_semantics = [#tpu.dimension_semantics<parallel>, #tpu.dimension_semantics<parallel>], iteration_bounds = array<i64: 2, 1>, scalar_prefetch = 0 : i64, scratch_operands = 0 : i64, tpu.core_type = #tpu.core_type<tc>, window_params = [{transform_indices = @transform_0, window_bounds = array<i64: 2, 12>}, {transform_indices = @transform_1, window_bounds = array<i64: 1, 3, 2, 128>}, {transform_indices = @transform_2, window_bounds = array<i64: 1, 2, 2, 128>}]} {
    %0 = arith.index_cast %arg0 : i32 to index
    %c0 = arith.constant 0 : index
    %1 = memref.load %arg2[%0, %c0] : memref<2x12xf32, #tpu.memory_space<smem>>
    %2 = arith.index_cast %arg0 : i32 to index
    %c1 = arith.constant 1 : index
    %3 = memref.load %arg2[%2, %c1] : memref<2x12xf32, #tpu.memory_space<smem>>
    %4 = arith.index_cast %arg0 : i32 to index
    %c2 = arith.constant 2 : index
    %5 = memref.load %arg2[%4, %c2] : memref<2x12xf32, #tpu.memory_space<smem>>
    %6 = arith.index_cast %arg0 : i32 to index
    %c3 = arith.constant 3 : index
    %7 = memref.load %arg2[%6, %c3] : memref<2x12xf32, #tpu.memory_space<smem>>
    %8 = arith.index_cast %arg0 : i32 to index
    %c4 = arith.constant 4 : index
    %9 = memref.load %arg2[%8, %c4] : memref<2x12xf32, #tpu.memory_space<smem>>
    %10 = arith.index_cast %arg0 : i32 to index
    %c5 = arith.constant 5 : index
    %11 = memref.load %arg2[%10, %c5] : memref<2x12xf32, #tpu.memory_space<smem>>
    %12 = arith.index_cast %arg0 : i32 to index
    %c6 = arith.constant 6 : index
    %13 = memref.load %arg2[%12, %c6] : memref<2x12xf32, #tpu.memory_space<smem>>
    %14 = arith.index_cast %arg0 : i32 to index
    %c7 = arith.constant 7 : index
    %15 = memref.load %arg2[%14, %c7] : memref<2x12xf32, #tpu.memory_space<smem>>
    %16 = arith.index_cast %arg0 : i32 to index
    %c8 = arith.constant 8 : index
    %17 = memref.load %arg2[%16, %c8] : memref<2x12xf32, #tpu.memory_space<smem>>
    %18 = arith.index_cast %arg0 : i32 to index
    %c9 = arith.constant 9 : index
    %19 = memref.load %arg2[%18, %c9] : memref<2x12xf32, #tpu.memory_space<smem>>
    %20 = arith.index_cast %arg0 : i32 to index
    %c10 = arith.constant 10 : index
    %21 = memref.load %arg2[%20, %c10] : memref<2x12xf32, #tpu.memory_space<smem>>
    %22 = arith.index_cast %arg0 : i32 to index
    %c11 = arith.constant 11 : index
    %23 = memref.load %arg2[%22, %c11] : memref<2x12xf32, #tpu.memory_space<smem>>
    %c0_0 = arith.constant 0 : index
    %c0_1 = arith.constant 0 : index
    %c0_2 = arith.constant 0 : index
    %c0_3 = arith.constant 0 : index
    %24 = vector.load %arg3[%c0_0, %c0_1, %c0_2, %c0_3] : memref<1x3x2x128xf32, #tpu.memory_space<vmem>>, vector<1x1x2x128xf32>
    %25 = vector.shape_cast %24 : vector<1x1x2x128xf32> to vector<2x128xf32>
    %c0_4 = arith.constant 0 : index
    %c1_5 = arith.constant 1 : index
    %c0_6 = arith.constant 0 : index
    %c0_7 = arith.constant 0 : index
    %26 = vector.load %arg3[%c0_4, %c1_5, %c0_6, %c0_7] : memref<1x3x2x128xf32, #tpu.memory_space<vmem>>, vector<1x1x2x128xf32>
    %27 = vector.shape_cast %26 : vector<1x1x2x128xf32> to vector<2x128xf32>
    %c0_8 = arith.constant 0 : index
    %c2_9 = arith.constant 2 : index
    %c0_10 = arith.constant 0 : index
    %c0_11 = arith.constant 0 : index
    %28 = vector.load %arg3[%c0_8, %c2_9, %c0_10, %c0_11] : memref<1x3x2x128xf32, #tpu.memory_space<vmem>>, vector<1x1x2x128xf32>
    %29 = vector.shape_cast %28 : vector<1x1x2x128xf32> to vector<2x128xf32>
    %30 = vector.broadcast %1 : f32 to vector<2x128xf32>
    %31 = arith.mulf %30, %25 : vector<2x128xf32>
    %32 = vector.broadcast %3 : f32 to vector<2x128xf32>
    %33 = arith.mulf %32, %27 : vector<2x128xf32>
    %34 = arith.addf %31, %33 : vector<2x128xf32>
    %35 = vector.broadcast %5 : f32 to vector<2x128xf32>
    %36 = arith.mulf %35, %29 : vector<2x128xf32>
    %37 = arith.addf %34, %36 : vector<2x128xf32>
    %38 = vector.broadcast %7 : f32 to vector<2x128xf32>
    %39 = arith.addf %37, %38 : vector<2x128xf32>
    %40 = vector.broadcast %9 : f32 to vector<2x128xf32>
    %41 = arith.mulf %40, %25 : vector<2x128xf32>
    %42 = vector.broadcast %11 : f32 to vector<2x128xf32>
    %43 = arith.mulf %42, %27 : vector<2x128xf32>
    %44 = arith.addf %41, %43 : vector<2x128xf32>
    %45 = vector.broadcast %13 : f32 to vector<2x128xf32>
    %46 = arith.mulf %45, %29 : vector<2x128xf32>
    %47 = arith.addf %44, %46 : vector<2x128xf32>
    %48 = vector.broadcast %15 : f32 to vector<2x128xf32>
    %49 = arith.addf %47, %48 : vector<2x128xf32>
    %50 = vector.broadcast %17 : f32 to vector<2x128xf32>
    %51 = arith.mulf %50, %25 : vector<2x128xf32>
    %52 = vector.broadcast %19 : f32 to vector<2x128xf32>
    %53 = arith.mulf %52, %27 : vector<2x128xf32>
    %54 = arith.addf %51, %53 : vector<2x128xf32>
    %55 = vector.broadcast %21 : f32 to vector<2x128xf32>
    %56 = arith.mulf %55, %29 : vector<2x128xf32>
    %57 = arith.addf %54, %56 : vector<2x128xf32>
    %58 = vector.broadcast %23 : f32 to vector<2x128xf32>
    %59 = arith.addf %57, %58 : vector<2x128xf32>
    %60 = tpu.reciprocal %59 : vector<2x128xf32> -> vector<2x128xf32>
    %61 = arith.mulf %39, %60 : vector<2x128xf32>
    %c0_12 = arith.constant 0 : index
    %c0_13 = arith.constant 0 : index
    %c0_14 = arith.constant 0 : index
    %c0_15 = arith.constant 0 : index
    %62 = vector.load %arg4[%c0_12, %c0_13, %c0_14, %c0_15] : memref<1x2x2x128xf32, #tpu.memory_space<vmem>>, vector<1x1x2x128xf32>
    %63 = vector.shape_cast %62 : vector<1x1x2x128xf32> to vector<2x128xf32>
    %64 = vector.shape_cast %61 : vector<2x128xf32> to vector<1x1x2x128xf32>
    tpu.vector_store %arg4[%c0_12, %c0_13, %c0_14, %c0_15], %64 {strides = array<i32>} : memref<1x2x2x128xf32, #tpu.memory_space<vmem>>, vector<1x1x2x128xf32>,
    %65 = arith.mulf %49, %60 : vector<2x128xf32>
    %c0_16 = arith.constant 0 : index
    %c1_17 = arith.constant 1 : index
    %c0_18 = arith.constant 0 : index
    %c0_19 = arith.constant 0 : index
    %66 = vector.load %arg4[%c0_16, %c1_17, %c0_18, %c0_19] : memref<1x2x2x128xf32, #tpu.memory_space<vmem>>, vector<1x1x2x128xf32>
    %67 = vector.shape_cast %66 : vector<1x1x2x128xf32> to vector<2x128xf32>
    %68 = vector.shape_cast %65 : vector<2x128xf32> to vector<1x1x2x128xf32>
    tpu.vector_store %arg4[%c0_16, %c1_17, %c0_18, %c0_19], %68 {strides = array<i32>} : memref<1x2x2x128xf32, #tpu.memory_space<vmem>>, vector<1x1x2x128xf32>,
    return
  }
  func.func @transform_0(%arg0: i32, %arg1: i32) -> (i32, i32) {
    %c0_i32 = arith.constant 0 : i32
    %c0_i32_0 = arith.constant 0 : i32
    %c0_i32_1 = arith.constant 0 : i32
    return %c0_i32, %c0_i32_0 : i32, i32
  }
  func.func @transform_1(%arg0: i32, %arg1: i32) -> (i32, i32, i32, i32) {
    %c0_i32 = arith.constant 0 : i32
    %c0_i32_0 = arith.constant 0 : i32
    %c0_i32_1 = arith.constant 0 : i32
    return %arg0, %c0_i32, %arg1, %c0_i32_0 : i32, i32, i32, i32
  }
  func.func @transform_2(%arg0: i32, %arg1: i32) -> (i32, i32, i32, i32) {
    %c0_i32 = arith.constant 0 : i32
    %c0_i32_0 = arith.constant 0 : i32
    %c0_i32_1 = arith.constant 0 : i32
    return %arg0, %c0_i32, %arg1, %c0_i32_0 : i32, i32, i32, i32
  }
}

</mosaic_0001>

<llo_original>
// kernel: tpu_custom_call.1
$region0: #{tpu_custom_call.1}
  #allocation0 [shape = 'u32[]', space=smem, size = 0x4, offset = 0x4, fixed_abs, tag = 'smem constant byte address 0x4 - core index']
  #allocation1 [shape = 'u32[144,128]{1,0:T(1,128)}', space=vmem, size = 0x12000, scoped, tag = 'internal scratch']
  %s0 = inlined_call_operand.hbm [shape: f32[2,12], index: 0, kind: input, shape index: {}]
  %s1 = inlined_call_operand.hbm [shape: f32[2,3,2,128], index: 1, kind: input, shape index: {}]
  %s2 = inlined_call_operand.hbm [shape: f32[2,2,2,128], index: 2, kind: output, shape index: {}]
  %s3 = sld [smem:[#allocation0]]
  $region49: #{tpu_custom_call.1} parent=0
    _
  %s5 = ssub.s32 1, %s3
  %s6 = scalar_select 0, %s5, %s3
  $region1: #{tpu_custom_call.1} parent=0
    #allocation2 [shape = 'u8[1024]{0}', space=smem, size = 0x400, scoped, tag = 'input window, operand 0, single buffered']
    #allocation3 [shape = 's32[2]{0}', space=sflag, size = 0x8, scoped, tag = 'scoped memory for tpu_custom_call.1']
    #allocation4 [shape = 's32[2]{0}', space=sflag, size = 0x8, scoped, tag = 'scoped memory for tpu_custom_call.1']
    #allocation5 [shape = 's32[2]{0}', space=sflag, size = 0x8, scoped, tag = 'scoped memory for tpu_custom_call.1']
    #allocation6 [shape = 'u8[6144]{0}', space=vmem, size = 0x1800, scoped, tag = 'input window, operand 1']
    #allocation7 [shape = 'u8[4096]{0}', space=vmem, size = 0x1000, scoped, tag = 'output window, operand 0']
    %7 = vsyncpa [#allocation5], 0
    %8 = vsyncpa [#allocation3], 0
    %s9 = scalar_lea.sflag [#allocation3], 1
    %10 = vsyncpa %s9, 0
    %11 = vsyncpa [#allocation4], 0
    %s12 = scalar_lea.sflag [#allocation4], 1
    %13 = vsyncpa %s12, 0
    loop: start=0, step=1, limit=4
    $region2: #{tpu_custom_call.1} parent=1 // loop_pre_header
      _
    $region3: #{tpu_custom_call.1} parent=1 // loop_header
      %s15 = sphi 0, %s19
      %p16 = scmp.ge.s32.totalorder %s15, 4
      %s22 = sphi 0, %s34
      %s23 = sphi 0, %s30
      %s24 = sphi 0, %s22
      %s25 = sphi 0, %s23
      %s26 = sphi 0, %s24
      %s27 = sphi 0, %s25
      %s35 = sphi 0, %s35
      %s37 = sphi 0, %s35
      %s38 = sphi 0, %s37
      %s52 = sphi 0, %s38
      %s60 = sphi 0, %s62
      %s63 = sphi 0, %s60
      %s64 = sphi 0, %s63
      %s80 = sphi 0, %s64
      %s88 = sphi 0, %s90
      %s91 = sphi 0, %s88
      %s92 = sphi 0, %s91
      %s108 = sphi 0, %s92
    $region4: #{tpu_custom_call.1} parent=1 // loop_header_branch
      %18 = sbr.rel (%p16) target = $region8
    $region5: #{tpu_custom_call.1} parent=1 // loop_body
      %s20 = ssub.s32 %s15, 1
      %s21 = ssub.s32 %s15, 2
      %s28 = sadd.s32 1, %s23
      %p29 = scmp.ge.s32.totalorder %s28, 1
      %s30 = scalar_select %p29, 0, %s28
      %s31 = sadd.s32 1, %s22
      %s32 = scalar_select %p29, %s31, %s22
      %p33 = scmp.ge.s32.totalorder %s32, 2
      %s34 = scalar_select %p33, 0, %s32
      %s36 = sadd.s32 %s35, 1
      %p39 = scmp.eq.s32.totalorder %s15, 1
      %p40 = scmp.ne.s32.totalorder %s35, %s37
      %p41 = scmp.eq.s32.totalorder %s15, 0
      %p42 = por %p40, %p41
      %p43 = scmp.ne.s32.totalorder %s35, %s37
      %p44 = scmp.eq.s32.totalorder %s20, 1
      %p45 = por %p43, %p44
      %p46 = scmp.ne.s32.totalorder %s37, %s38
      %p47 = scmp.eq.s32.totalorder %s20, 0
      %p48 = por %p46, %p47
      %p49 = scmp.ne.s32.totalorder %s37, %s38
      %p50 = scmp.eq.s32.totalorder %s21, 1
      %p51 = por %p49, %p50
      %p53 = scmp.ne.s32.totalorder %s38, %s52
      %p54 = scmp.eq.s32.totalorder %s21, 0
      %p55 = por %p53, %p54
      %s56 = ssub.s32 %s22, %s34
      %s57 = ssub.s32 %s23, %s30
      %s58 = sor.u32 %s56, %s57
      %p59 = scmp.eq.s32.totalorder %s58, 0
      %s61 = sadd.s32 %s60, 1
      %s62 = scalar_select %p59, %s60, %s61
      %p65 = pneg %p59
      %p66 = scmp.eq.s32.totalorder %s15, 1
      %p67 = por %p65, %p66
      %p68 = scmp.ne.s32.totalorder %s60, %s63
      %p69 = scmp.eq.s32.totalorder %s15, 0
      %p70 = por %p68, %p69
      %p71 = scmp.ne.s32.totalorder %s60, %s63
      %p72 = scmp.eq.s32.totalorder %s20, 1
      %p73 = por %p71, %p72
      %p74 = scmp.ne.s32.totalorder %s63, %s64
      %p75 = scmp.eq.s32.totalorder %s20, 0
      %p76 = por %p74, %p75
      %p77 = scmp.ne.s32.totalorder %s63, %s64
      %p78 = scmp.eq.s32.totalorder %s21, 1
      %p79 = por %p77, %p78
      %p81 = scmp.ne.s32.totalorder %s64, %s80
      %p82 = scmp.eq.s32.totalorder %s21, 0
      %p83 = por %p81, %p82
      %s84 = ssub.s32 %s22, %s34
      %s85 = ssub.s32 %s23, %s30
      %s86 = sor.u32 %s84, %s85
      %p87 = scmp.eq.s32.totalorder %s86, 0
      %s89 = sadd.s32 %s88, 1
      %s90 = scalar_select %p87, %s88, %s89
      %p93 = pneg %p87
      %p94 = scmp.eq.s32.totalorder %s15, 1
      %p95 = por %p93, %p94
      %p96 = scmp.ne.s32.totalorder %s88, %s91
      %p97 = scmp.eq.s32.totalorder %s15, 0
      %p98 = por %p96, %p97
      %p99 = scmp.ne.s32.totalorder %s88, %s91
      %p100 = scmp.eq.s32.totalorder %s20, 1
      %p101 = por %p99, %p100
      %p102 = scmp.ne.s32.totalorder %s91, %s92
      %p103 = scmp.eq.s32.totalorder %s20, 0
      %p104 = por %p102, %p103
      %p105 = scmp.ne.s32.totalorder %s91, %s92
      %p106 = scmp.eq.s32.totalorder %s21, 1
      %p107 = por %p105, %p106
      %p109 = scmp.ne.s32.totalorder %s92, %s108
      %p110 = scmp.eq.s32.totalorder %s21, 0
      %p111 = por %p109, %p110
      %p112 = scmp.le.s32.totalorder 1, %s15
      %p113 = scmp.lt.s32.totalorder %s15, 3
      %p114 = pnand %p112, %p113
      %p115 = pneg %p114
      // Predicated region
      $region9: #{tpu_custom_call.1} parent=5 // pred_check
        _
      $region10: #{tpu_custom_call.1} parent=5 // pred_check_branch
        %117 = sbr.rel (%p114) target = $region12
      $region11: #{tpu_custom_call.1} parent=5 // pred_region
        %s118 = ssub.s32 %s15, 1
        // Predicated region
        $region13: #{tpu_custom_call.1} parent=11 // pred_check
          %p119 = pneg %p48
        $region14: #{tpu_custom_call.1} parent=11 // pred_check_branch
          %121 = sbr.rel (%p119) target = $region16
        $region15: #{tpu_custom_call.1} parent=11 // pred_region
          %s123 = ssub.s32 32, 32
          %124 = vsyncadd [#allocation5], %s123
          %127 = dma.hbm_to_smem %s0, 32, [#allocation2], [#allocation5]
        $region16: #{tpu_custom_call.1} parent=11 // pred_fallthru
          _
      $region12: #{tpu_custom_call.1} parent=5 // pred_fallthru
        _
      %p128 = scmp.lt.s32.totalorder %s15, 2
      // Predicated region
      $region17: #{tpu_custom_call.1} parent=5 // pred_check
        %p129 = pneg %p128
      $region18: #{tpu_custom_call.1} parent=5 // pred_check_branch
        %131 = sbr.rel (%p129) target = $region20
      $region19: #{tpu_custom_call.1} parent=5 // pred_region
        // Predicated region
        $region21: #{tpu_custom_call.1} parent=19 // pred_check
          %p132 = pneg %p70
        $region22: #{tpu_custom_call.1} parent=19 // pred_check_branch
          %134 = sbr.rel (%p132) target = $region24
        $region23: #{tpu_custom_call.1} parent=19 // pred_region
          %s135 = sand.u32 %s60, 1
          %s136 = scalar_lea.sflag [#allocation3], %s135
          %s137 = sand.u32 %s60, 1
          %s138 = smul.addr %s137, 6
          %s139 = scalar_lea.vmem [#allocation6], %s138
          %s141 = ssub.s32 96, 96
          %142 = vsyncadd %s136, %s141
          %s143 = smul.addr %s22, 3
          %s144 = sadd.s32 %s23, %s143
          %s145 = smul.addr %s144, 32
          %s146 = scalar_lea.hbm %s1, %s145
          %s147 = sshll.u32 %s139, 4
          %s148 = int_to_ptr.vmem [resolvable:$true] %s147
          %153 = dma.hbm_to_vmem [thread:$0]  %s146, 96, %s148, %s136, 32, 32, 2
        $region24: #{tpu_custom_call.1} parent=19 // pred_fallthru
          _
      $region20: #{tpu_custom_call.1} parent=5 // pred_fallthru
        _
      %p154 = scmp.le.s32.totalorder 1, %s15
      %p155 = scmp.lt.s32.totalorder %s15, 3
      %p156 = pnand %p154, %p155
      %p157 = pneg %p156
      // Predicated region
      $region25: #{tpu_custom_call.1} parent=5 // pred_check
        _
      $region26: #{tpu_custom_call.1} parent=5 // pred_check_branch
        %159 = sbr.rel (%p156) target = $region28
      $region27: #{tpu_custom_call.1} parent=5 // pred_region
        %s160 = ssub.s32 %s15, 1
        // Predicated region
        $region29: #{tpu_custom_call.1} parent=27 // pred_check
          %p161 = pneg %p48
        $region30: #{tpu_custom_call.1} parent=27 // pred_check_branch
          %163 = sbr.rel (%p161) target = $region32
        $region31: #{tpu_custom_call.1} parent=27 // pred_region
          %164 = dma.done [#allocation5], 32
        $region32: #{tpu_custom_call.1} parent=27 // pred_fallthru
          _
        %s165 = sand.u32 %s63, 1
        %s166 = scalar_lea.sflag [#allocation3], %s165
        %s167 = sand.u32 %s63, 1
        %s168 = smul.addr %s167, 6
        %s169 = scalar_lea.vmem [#allocation6], %s168
        // Predicated region
        $region33: #{tpu_custom_call.1} parent=27 // pred_check
          %p170 = pneg %p76
        $region34: #{tpu_custom_call.1} parent=27 // pred_check_branch
          %172 = sbr.rel (%p170) target = $region36
        $region35: #{tpu_custom_call.1} parent=27 // pred_region
          %173 = dma.done %s166, 96
        $region36: #{tpu_custom_call.1} parent=27 // pred_fallthru
          _
        %174 = sfence
        %p175 = pneg %p48
        %p176 = pneg %p45
        %s177 = sand.u32 %s63, 1
        %s178 = scalar_lea.sflag [#allocation3], %s177
        %s179 = sand.u32 %s63, 1
        %s180 = smul.addr %s179, 6
        %s181 = scalar_lea.vmem [#allocation6], %s180
        %p182 = pneg %p76
        %p183 = pneg %p73
        %p184 = pneg %p104
        %p185 = pneg %p101
        %s186 = sand.u32 %s91, 1
        %s187 = scalar_lea.sflag [#allocation4], %s186
        %s188 = sand.u32 %s91, 1
        %s189 = smul.addr %s188, 4
        %s190 = scalar_lea.vmem [#allocation7], %s189
        %s191 = smul.u32 %s24, 128
        %s192 = sld [smem:[#allocation2 + %s191]]
        %s193 = sadd.s32 %s191, 1
        %s194 = sld [smem:[#allocation2 + %s193]]
        %s195 = sadd.s32 %s191, 2
        %s196 = sld [smem:[#allocation2 + %s195]]
        %s197 = sadd.s32 %s191, 3
        %s198 = sld [smem:[#allocation2 + %s197]]
        %s199 = sadd.s32 %s191, 4
        %s200 = sld [smem:[#allocation2 + %s199]]
        %s201 = sadd.s32 %s191, 5
        %s202 = sld [smem:[#allocation2 + %s201]]
        %s203 = sadd.s32 %s191, 6
        %s204 = sld [smem:[#allocation2 + %s203]]
        %s205 = sadd.s32 %s191, 7
        %s206 = sld [smem:[#allocation2 + %s205]]
        %s207 = sadd.s32 %s191, 8
        %s208 = sld [smem:[#allocation2 + %s207]]
        %s209 = sadd.s32 %s191, 9
        %s210 = sld [smem:[#allocation2 + %s209]]
        %s211 = sadd.s32 %s191, 10
        %s212 = sld [smem:[#allocation2 + %s211]]
        %s213 = sadd.s32 %s191, 11
        %s214 = sld [smem:[#allocation2 + %s213]]
        %v215 = vld [vmem:[%s169] sm:$0x3]
        %s216 = scalar_lea.vmem %s169, 2 [#allocation6]
        %v217 = vld [vmem:[%s216] sm:$0x3]
        %s218 = scalar_lea.vmem %s169, 4 [#allocation6]
        %v219 = vld [vmem:[%s218] sm:$0x3]
        %v220 = vstv %s192
        %v221 = vmul.f32 %v220, %v215
        %v222 = vstv %s194
        %v223 = vmul.f32 %v222, %v217
        %v224 = vadd.f32 %v221, %v223
        %v225 = vstv %s196
        %v226 = vmul.f32 %v225, %v219
        %v227 = vadd.f32 %v224, %v226
        %v228 = vstv %s198
        %v229 = vadd.f32 %v227, %v228
        %v230 = vstv %s200
        %v231 = vmul.f32 %v230, %v215
        %v232 = vstv %s202
        %v233 = vmul.f32 %v232, %v217
        %v234 = vadd.f32 %v231, %v233
        %v235 = vstv %s204
        %v236 = vmul.f32 %v235, %v219
        %v237 = vadd.f32 %v234, %v236
        %v238 = vstv %s206
        %v239 = vadd.f32 %v237, %v238
        %v240 = vstv %s208
        %v241 = vmul.f32 %v240, %v215
        %v242 = vstv %s210
        %v243 = vmul.f32 %v242, %v217
        %v244 = vadd.f32 %v241, %v243
        %v245 = vstv %s212
        %v246 = vmul.f32 %v245, %v219
        %v247 = vadd.f32 %v244, %v246
        %v248 = vstv %s214
        %v249 = vadd.f32 %v247, %v248
        %v250 = vrcp.pop %v249
        %v251 = vmul.f32 %v229, %v250
        %252 = vst [vmem:[%s190] sm:$0x3] %v251
        %v253 = vmul.f32 %v239, %v250
        %s254 = scalar_lea.vmem %s190, 2 [#allocation7]
        %255 = vst [vmem:[%s254] sm:$0x3] %v253
        %s256 = sand.u32 %s91, 1
        %s257 = scalar_lea.sflag [#allocation4], %s256
        %s258 = sand.u32 %s91, 1
        %s259 = smul.addr %s258, 4
        %s260 = scalar_lea.vmem [#allocation7], %s259
        // Predicated region
        $region37: #{tpu_custom_call.1} parent=27 // pred_check
          %p261 = pneg %p101
        $region38: #{tpu_custom_call.1} parent=27 // pred_check_branch
          %263 = sbr.rel (%p261) target = $region40
        $region39: #{tpu_custom_call.1} parent=27 // pred_region
          %s265 = ssub.s32 64, 64
          %266 = vsyncadd %s257, %s265
          %s267 = smul.addr %s24, 2
          %s268 = sadd.s32 %s25, %s267
          %s269 = smul.addr %s268, 32
          %s270 = scalar_lea.hbm %s2, %s269
          %s271 = sshll.u32 %s260, 4
          %s272 = int_to_ptr.vmem [resolvable:$true] %s271
          %277 = dma.vmem_to_hbm [thread:$0]  %s272, 64, %s270, %s257, 32, 32, 2
        $region40: #{tpu_custom_call.1} parent=27 // pred_fallthru
          _
      $region28: #{tpu_custom_call.1} parent=5 // pred_fallthru
        _
      %p278 = scmp.le.s32.totalorder 2, %s15
      // Predicated region
      $region41: #{tpu_custom_call.1} parent=5 // pred_check
        %p279 = pneg %p278
      $region42: #{tpu_custom_call.1} parent=5 // pred_check_branch
        %281 = sbr.rel (%p279) target = $region44
      $region43: #{tpu_custom_call.1} parent=5 // pred_region
        %s282 = ssub.s32 %s15, 2
        // Predicated region
        $region45: #{tpu_custom_call.1} parent=43 // pred_check
          %p283 = pneg %p107
        $region46: #{tpu_custom_call.1} parent=43 // pred_check_branch
          %285 = sbr.rel (%p283) target = $region48
        $region47: #{tpu_custom_call.1} parent=43 // pred_region
          %s286 = sand.u32 %s92, 1
          %s287 = scalar_lea.sflag [#allocation4], %s286
          %s288 = sand.u32 %s92, 1
          %s289 = smul.addr %s288, 4
          %s290 = scalar_lea.vmem [#allocation7], %s289
          %291 = dma.done %s287, 64
        $region48: #{tpu_custom_call.1} parent=43 // pred_fallthru
          _
      $region44: #{tpu_custom_call.1} parent=5 // pred_fallthru
        _
    $region6: #{tpu_custom_call.1} parent=1 // loop_footer
      %s19 = sadd.s32 1, %s15
    $region7: #{tpu_custom_call.1} parent=1 // loop_footer_branch
      %14 = sbr.rel target = $region3
    $region8: #{tpu_custom_call.1} parent=1 // loop_exit
      _
    %292 = vsyncpa [#allocation3], 1
    %s293 = scalar_lea.sflag [#allocation3], 1
    %294 = vsyncpa %s293, 1
    %295 = vsyncpa [#allocation4], 1
    %s296 = scalar_lea.sflag [#allocation4], 1
    %297 = vsyncpa %s296, 1
    %298 = vsyncpa [#allocation5], 1
    %s299 = scalar_lea.sflag [#allocation5], 1
    %300 = vsyncpa %s299, 1

</llo_original>
